<compile_context>
chip_gen: v7x
topology: tpu7x:2x2x1
jax: 0.10.0
libtpu: 0.0.40
codegen_flags: <defaults>
</compile_context>

<pallas_src>
import jax
import jax.numpy as jnp
from jax.experimental import pallas as pl
from jax.experimental.pallas import tpu as pltpu


def dot_attention_kernel(enc_ref, h_ref, wctx_ref, whid_ref, bc_ref, out_ref, attn_ref):
    # enc_ref  : (Bb, T, D)  encoder outputs for this batch block
    # h_ref    : (Bb, D)     decoder hidden for this batch block
    # wctx_ref : (D, D)      combined_layer weight (context half), pre-transposed
    # whid_ref : (D, D)      combined_layer weight (hidden half), pre-transposed
    # bc_ref   : (1, D)      combined_layer bias
    enc = enc_ref[...].astype(jnp.float32)          # (Bb, T, D)
    h = h_ref[...].astype(jnp.float32)              # (Bb, D)

    # scores[b, t] = sum_d enc[b, t, d] * h[b, d]
    # VPU elementwise multiply + lane (last-dim) reduce — avoids the enc.T relayout
    # and the M=1 matvec on the MXU.
    scores = jnp.sum(enc * h[:, None, :], axis=-1)  # (Bb, T)

    # softmax over the sequence dim (dim=1 in PyTorch)
    m = jnp.max(scores, axis=-1, keepdims=True)
    p = jnp.exp(scores - m)
    denom = jnp.sum(p, axis=-1, keepdims=True)
    # exact reciprocal keeps 1e-5 parity with the reference; approx=True would use the EUP.
    attn = p * pl.reciprocal(denom, approx=False)   # (Bb, T)
    attn_ref[...] = attn.astype(attn_ref.dtype)

    # context[b, d] = sum_t attn[b, t] * enc[b, t, d]
    # elementwise multiply + sublane reduce (XLU) — keeps the MXU for the linear below.
    context = jnp.sum(attn[:, :, None] * enc, axis=1)  # (Bb, D)

    # combined_layer(cat([context, h])) without any in-kernel concatenation:
    #   [context ; h] @ wc.T == context @ wc[:, :D].T + h @ wc[:, D:].T
    # Two (Bb, D) @ (D, D) MXU matmuls with a proper M dimension.
    out = jnp.dot(context, wctx_ref[...].astype(jnp.float32),
                  preferred_element_type=jnp.float32)
    out = out + jnp.dot(h, whid_ref[...].astype(jnp.float32),
                        preferred_element_type=jnp.float32)
    out = out + bc_ref[...].astype(jnp.float32)
    out_ref[...] = jnp.tanh(out).astype(out_ref.dtype)


def attention_layer_forward(decoder_hidden, encoder_outputs, wc, bc, *, block_b=256):
    """JAX/Pallas equivalent of AttentionLayer.forward (method='dot' default path).

    decoder_hidden : (B, D) or (num_layers, B, D)  (last layer is taken)
    encoder_outputs: (B, T, D)
    wc             : (D, 2D)  combined_layer.weight (PyTorch convention)
    bc             : (D,)     combined_layer.bias
    block_b        : batch rows processed per grid step (tune per generation;
                     128 on v5e, 256 on v6e/v7x is a good default).
    Returns (tanh(combined), attn_weights) with shapes (B, D), (B, T).
    """
    if decoder_hidden.ndim == 3:                    # _prepare_decoder_hidden
        decoder_hidden = decoder_hidden[-1]
    # encoder_projection is Identity (encoder_hidden_size == decoder_hidden_size)
    B, T, D = encoder_outputs.shape

    # Pre-split the combined_layer weight so the kernel needs no concat/relayout.
    wc_ctx_t = wc[:, :D].T                          # (D, D)
    wc_hid_t = wc[:, D:].T                          # (D, D)
    bc2 = bc.reshape(1, D)

    # Batch blocking: process Bb rows per grid step.  block_b (256) is a multiple of 8,
    # so padded blocks satisfy the (8, 128) sublane rule; small B runs as a single block.
    Bb = B if B <= block_b else block_b
    Bp = ((B + Bb - 1) // Bb) * Bb
    if Bp != B:
        pad = Bp - B
        encoder_outputs = jnp.pad(encoder_outputs, ((0, pad), (0, 0), (0, 0)))
        decoder_hidden = jnp.pad(decoder_hidden, ((0, pad), (0, 0)))
    nb = Bp // Bb

    # TODO(synk): for bf16 deployments, pass encoder_outputs / wc as bf16 — the kernel
    # already casts to f32 internally, keeping softmax and accumulation in f32.
    out, attn = pl.pallas_call(
        dot_attention_kernel,
        out_shape=(
            jax.ShapeDtypeStruct((Bp, D), jnp.float32),
            jax.ShapeDtypeStruct((Bp, T), jnp.float32),
        ),
        grid_spec=pltpu.PrefetchScalarGridSpec(
            num_scalar_prefetch=0,
            grid=(nb,),
            in_specs=[
                pl.BlockSpec((Bb, T, D), lambda b: (b, 0, 0)),   # encoder_outputs block
                pl.BlockSpec((Bb, D), lambda b: (b, 0)),         # decoder_hidden block
                pl.BlockSpec((D, D), lambda b: (0, 0)),          # wc context half (resident)
                pl.BlockSpec((D, D), lambda b: (0, 0)),          # wc hidden half (resident)
                pl.BlockSpec((1, D), lambda b: (0, 0)),          # bias (resident)
            ],
            out_specs=[
                pl.BlockSpec((Bb, D), lambda b: (b, 0)),         # tanh(combined)
                pl.BlockSpec((Bb, T), lambda b: (b, 0)),         # attn_weights
            ],
        ),
        compiler_params=pltpu.CompilerParams(
            dimension_semantics=("parallel",),       # batch blocks are independent (megacore)
            vmem_limit_bytes=48 * 1024 * 1024,       # > v6e/v5e scoped default, < v7x 64 MiB physical
        ),
    )(encoder_outputs, decoder_hidden, wc_ctx_t, wc_hid_t, bc2)

    if Bp != B:
        out = out[:B]
        attn = attn[:B]
    return out, attn


def reference_forward(decoder_hidden, encoder_outputs, wc, bc):
    """Pure-JAX reference of the same PyTorch forward (for verification)."""
    if decoder_hidden.ndim == 3:
        decoder_hidden = decoder_hidden[-1]
    query = decoder_hidden[:, None, :]                              # (B, 1, D)
    scores = jnp.einsum('btd,bqd->bt', encoder_outputs, query)      # (B, T)
    attn = jax.nn.softmax(scores, axis=1)
    context = jnp.einsum('bt,btd->bd', attn, encoder_outputs)       # (B, D)
    combined = jnp.concatenate([context, decoder_hidden], axis=1)   # (B, 2D)
    out = jnp.tanh(combined @ wc.T + bc)
    return out, attn


if __name__ == "__main__":
    B, T, D = 2, 8, 32   # batch, encoder seq len, decoder_hidden_size (nhead=4 divides D)

    key = jax.random.PRNGKey(0)
    k_enc, k_hid, k_w, k_b = jax.random.split(key, 4)

    encoder_outputs = jax.random.normal(k_enc, (B, T, D), dtype=jnp.float32)
    decoder_hidden = jax.random.normal(k_hid, (B, D), dtype=jnp.float32)

    # combined_layer = nn.Linear(2D, D): PyTorch default init U(-1/sqrt(2D), 1/sqrt(2D))
    bound = 1.0 / jnp.sqrt(2.0 * D)
    wc = jax.random.uniform(k_w, (D, 2 * D), jnp.float32, -bound, bound)
    bc = jax.random.uniform(k_b, (D,), jnp.float32, -bound, bound)
    # TODO(synk): qkv_proj / out_proj / flash / xformers / multiscale / autocorr / temporal
    # branches are unused in the default 'dot' method path and are not materialized here.

    # --- single-block path (B <= block_b) ---
    out, attn = attention_layer_forward(decoder_hidden, encoder_outputs, wc, bc)
    out = jax.block_until_ready(out)
    attn = jax.block_until_ready(attn)
    ref_out, ref_attn = reference_forward(decoder_hidden, encoder_outputs, wc, bc)
    assert jnp.allclose(out, ref_out, atol=1e-5, rtol=1e-5)
    assert jnp.allclose(attn, ref_attn, atol=1e-5, rtol=1e-5)

    # --- multi-block + padding path (exercises grid > 1 and the batch-pad slice) ---
    B2 = 20
    k_enc2, k_hid2 = jax.random.split(jax.random.PRNGKey(1), 2)
    enc2 = jax.random.normal(k_enc2, (B2, T, D), dtype=jnp.float32)
    hid2 = jax.random.normal(k_hid2, (B2, D), dtype=jnp.float32)
    out2, attn2 = attention_layer_forward(hid2, enc2, wc, bc, block_b=8)
    out2 = jax.block_until_ready(out2)
    attn2 = jax.block_until_ready(attn2)
    ref_out2, ref_attn2 = reference_forward(hid2, enc2, wc, bc)
    assert jnp.allclose(out2, ref_out2, atol=1e-5, rtol=1e-5)
    assert jnp.allclose(attn2, ref_attn2, atol=1e-5, rtol=1e-5)

    print("KERNEL_OK")
</pallas_src>

<mosaic_0001>
module attributes {stable_mosaic.version = 11 : i64} {
  func.func @dot_attention_kernel(%arg0: i32, %arg1: memref<2x8x32xf32, #tpu.memory_space<vmem>>, %arg2: memref<2x32xf32, #tpu.memory_space<vmem>>, %arg3: memref<32x32xf32, #tpu.memory_space<vmem>>, %arg4: memref<32x32xf32, #tpu.memory_space<vmem>>, %arg5: memref<1x32xf32, #tpu.memory_space<vmem>>, %arg6: memref<2x32xf32, #tpu.memory_space<vmem>>, %arg7: memref<2x8xf32, #tpu.memory_space<vmem>>) attributes {dimension_semantics = [#tpu.dimension_semantics<parallel>], iteration_bounds = array<i64: 1>, scalar_prefetch = 0 : i64, scratch_operands = 0 : i64, tpu.core_type = #tpu.core_type<tc>, window_params = [{transform_indices = @transform_0, window_bounds = array<i64: 2, 8, 32>}, {transform_indices = @transform_1, window_bounds = array<i64: 2, 32>}, {pipeline_mode = #tpu.pipeline_mode<synchronous>, transform_indices = @transform_2, window_bounds = array<i64: 32, 32>}, {pipeline_mode = #tpu.pipeline_mode<synchronous>, transform_indices = @transform_3, window_bounds = array<i64: 32, 32>}, {pipeline_mode = #tpu.pipeline_mode<synchronous>, transform_indices = @transform_4, window_bounds = array<i64: 1, 32>}, {transform_indices = @transform_5, window_bounds = array<i64: 2, 32>}, {transform_indices = @transform_6, window_bounds = array<i64: 2, 8>}]} {
    %c0 = arith.constant 0 : index
    %c0_0 = arith.constant 0 : index
    %c0_1 = arith.constant 0 : index
    %0 = vector.load %arg1[%c0, %c0_0, %c0_1] : memref<2x8x32xf32, #tpu.memory_space<vmem>>, vector<2x8x32xf32>
    %c0_2 = arith.constant 0 : index
    %c0_3 = arith.constant 0 : index
    %1 = vector.load %arg2[%c0_2, %c0_3] : memref<2x32xf32, #tpu.memory_space<vmem>>, vector<2x32xf32>
    %2 = vector.shape_cast %1 : vector<2x32xf32> to vector<2x1x32xf32>
    %3 = vector.broadcast %2 : vector<2x1x32xf32> to vector<2x8x32xf32>
    %4 = arith.mulf %0, %3 : vector<2x8x32xf32>
    %cst = arith.constant dense<0.000000e+00> : vector<2x8xf32>
    %5 = vector.multi_reduction <add>, %4, %cst [2] : vector<2x8x32xf32> to vector<2x8xf32>
    %cst_4 = arith.constant dense<0xFF800000> : vector<2xf32>
    %6 = vector.multi_reduction <maximumf>, %5, %cst_4 [1] : vector<2x8xf32> to vector<2xf32>
    %7 = vector.shape_cast %6 : vector<2xf32> to vector<2x1xf32>
    %8 = vector.broadcast %7 : vector<2x1xf32> to vector<2x8xf32>
    %9 = arith.subf %5, %8 : vector<2x8xf32>
    %10 = math.exp %9 : vector<2x8xf32>
    %cst_5 = arith.constant dense<0.000000e+00> : vector<2xf32>
    %11 = vector.multi_reduction <add>, %10, %cst_5 [1] : vector<2x8xf32> to vector<2xf32>
    %12 = vector.shape_cast %11 : vector<2xf32> to vector<2x1xf32>
    %13 = tpu.reciprocal %12 : vector<2x1xf32> -> vector<2x1xf32>
    %14 = vector.broadcast %13 : vector<2x1xf32> to vector<2x8xf32>
    %15 = arith.mulf %10, %14 : vector<2x8xf32>
    %c0_6 = arith.constant 0 : index
    %c0_7 = arith.constant 0 : index
    %16 = vector.load %arg7[%c0_6, %c0_7] : memref<2x8xf32, #tpu.memory_space<vmem>>, vector<2x8xf32>
    tpu.vector_store %arg7[%c0_6, %c0_7], %15 {strides = array<i32>} : memref<2x8xf32, #tpu.memory_space<vmem>>, vector<2x8xf32>,
    %17 = vector.shape_cast %15 : vector<2x8xf32> to vector<2x8x1xf32>
    %18 = vector.broadcast %17 : vector<2x8x1xf32> to vector<2x8x32xf32>
    %19 = arith.mulf %18, %0 : vector<2x8x32xf32>
    %cst_8 = arith.constant dense<0.000000e+00> : vector<2x32xf32>
    %20 = vector.multi_reduction <add>, %19, %cst_8 [1] : vector<2x8x32xf32> to vector<2x32xf32>
    %c0_9 = arith.constant 0 : index
    %c0_10 = arith.constant 0 : index
    %21 = vector.load %arg3[%c0_9, %c0_10] : memref<32x32xf32, #tpu.memory_space<vmem>>, vector<32x32xf32>
    %cst_11 = arith.constant dense<0.000000e+00> : vector<2x32xf32>
    %22 = tpu.matmul %20, %21, %cst_11 {dimension_numbers = #tpu.dot_dimension_numbers<[1], [0], [0], [1], [0, 0, 1, 1], [], []>} : vector<2x32xf32>, vector<32x32xf32>, vector<2x32xf32> -> vector<2x32xf32>
    %c0_12 = arith.constant 0 : index
    %c0_13 = arith.constant 0 : index
    %23 = vector.load %arg4[%c0_12, %c0_13] : memref<32x32xf32, #tpu.memory_space<vmem>>, vector<32x32xf32>
    %cst_14 = arith.constant dense<0.000000e+00> : vector<2x32xf32>
    %24 = tpu.matmul %1, %23, %cst_14 {dimension_numbers = #tpu.dot_dimension_numbers<[1], [0], [0], [1], [0, 0, 1, 1], [], []>} : vector<2x32xf32>, vector<32x32xf32>, vector<2x32xf32> -> vector<2x32xf32>
    %25 = arith.addf %22, %24 : vector<2x32xf32>
    %c0_15 = arith.constant 0 : index
    %c0_16 = arith.constant 0 : index
    %26 = vector.load %arg5[%c0_15, %c0_16] : memref<1x32xf32, #tpu.memory_space<vmem>>, vector<1x32xf32>
    %27 = vector.broadcast %26 : vector<1x32xf32> to vector<2x32xf32>
    %28 = arith.addf %25, %27 : vector<2x32xf32>
    %29 = math.tanh %28 : vector<2x32xf32>
    %c0_17 = arith.constant 0 : index
    %c0_18 = arith.constant 0 : index
    %30 = vector.load %arg6[%c0_17, %c0_18] : memref<2x32xf32, #tpu.memory_space<vmem>>, vector<2x32xf32>
    tpu.vector_store %arg6[%c0_17, %c0_18], %29 {strides = array<i32>} : memref<2x32xf32, #tpu.memory_space<vmem>>, vector<2x32xf32>,
    return
  }
  func.func @transform_0(%arg0: i32) -> (i32, i32, i32) {
    %c0_i32 = arith.constant 0 : i32
    %c0_i32_0 = arith.constant 0 : i32
    %c0_i32_1 = arith.constant 0 : i32
    return %arg0, %c0_i32, %c0_i32_0 : i32, i32, i32
  }
  func.func @transform_1(%arg0: i32) -> (i32, i32) {
    %c0_i32 = arith.constant 0 : i32
    %c0_i32_0 = arith.constant 0 : i32
    return %arg0, %c0_i32 : i32, i32
  }
  func.func @transform_2(%arg0: i32) -> (i32, i32) {
    %c0_i32 = arith.constant 0 : i32
    %c0_i32_0 = arith.constant 0 : i32
    %c0_i32_1 = arith.constant 0 : i32
    return %c0_i32, %c0_i32_0 : i32, i32
  }
  func.func @transform_3(%arg0: i32) -> (i32, i32) {
    %c0_i32 = arith.constant 0 : i32
    %c0_i32_0 = arith.constant 0 : i32
    %c0_i32_1 = arith.constant 0 : i32
    return %c0_i32, %c0_i32_0 : i32, i32
  }
  func.func @transform_4(%arg0: i32) -> (i32, i32) {
    %c0_i32 = arith.constant 0 : i32
    %c0_i32_0 = arith.constant 0 : i32
    %c0_i32_1 = arith.constant 0 : i32
    return %c0_i32, %c0_i32_0 : i32, i32
  }
  func.func @transform_5(%arg0: i32) -> (i32, i32) {
    %c0_i32 = arith.constant 0 : i32
    %c0_i32_0 = arith.constant 0 : i32
    return %arg0, %c0_i32 : i32, i32
  }
  func.func @transform_6(%arg0: i32) -> (i32, i32) {
    %c0_i32 = arith.constant 0 : i32
    %c0_i32_0 = arith.constant 0 : i32
    return %arg0, %c0_i32 : i32, i32
  }
}

</mosaic_0001>

<llo_original>
// kernel: tpu_custom_call.1
$region0: #{tpu_custom_call.1}
  #allocation0 [shape = 'u32[]', space=smem, size = 0x4, offset = 0x4, fixed_abs, tag = 'smem constant byte address 0x4 - core index']
  #allocation1 [shape = 'u32[144,128]{1,0:T(1,128)}', space=vmem, size = 0x12000, scoped, tag = 'internal scratch']
  %s0 = inlined_call_operand.hbm [shape: f32[2,8,32], index: 0, kind: input, shape index: {}]
  %s1 = inlined_call_operand.vmem [shape: f32[2,32], index: 1, kind: input, shape index: {}]
  %s2 = inlined_call_operand.hbm [shape: f32[32,32], index: 2, kind: input, shape index: {}]
  %s3 = inlined_call_operand.hbm [shape: f32[32,32], index: 3, kind: input, shape index: {}]
  %s4 = inlined_call_operand.vmem [shape: f32[1,32], index: 4, kind: input, shape index: {}]
  %s5 = inlined_call_operand.hbm [shape: f32[2,32], index: 5, kind: output, shape index: {0}]
  %s6 = inlined_call_operand.hbm [shape: f32[2,8], index: 6, kind: output, shape index: {1}]
  %7 = xla_tuple %s5, %s6
  %s8 = sld [smem:[#allocation0]]
  $region50: #{tpu_custom_call.1} parent=0
    _
  %s10 = ssub.s32 1, %s8
  %s11 = scalar_select 0, %s10, %s8
  $region1: #{tpu_custom_call.1} parent=0
    #allocation2 [shape = 'u8[8192]{0}', space=vmem, size = 0x2000, scoped, tag = 'input window, operand 0, single buffered']
    #allocation3 [shape = 's32[1]{0}', space=sflag, size = 0x4, scoped, tag = 'scoped memory for tpu_custom_call.1']
    #allocation4 [shape = 's32[1]{0}', space=sflag, size = 0x4, scoped, tag = 'scoped memory for tpu_custom_call.1']
    #allocation5 [shape = 'u8[16384]{0}', space=vmem, size = 0x4000, scoped, tag = 'input window, operand 2, single buffered']
    #allocation6 [shape = 's32[1]{0}', space=sflag, size = 0x4, scoped, tag = 'scoped memory for tpu_custom_call.1']
    #allocation7 [shape = 'u8[16384]{0}', space=vmem, size = 0x4000, scoped, tag = 'input window, operand 3, single buffered']
    #allocation8 [shape = 'u8[1024]{0}', space=vmem, size = 0x400, scoped, tag = 'output window, operand 0, single buffered']
    #allocation9 [shape = 'u8[1024]{0}', space=vmem, size = 0x400, scoped, tag = 'output window, operand 1, single buffered']
    #allocation10 [shape = 's32[1]{0}', space=sflag, size = 0x4, scoped, tag = 'scoped memory for tpu_custom_call.1']
    %12 = vsyncpa [#allocation3], 0
    %13 = vsyncpa [#allocation6], 0
    %14 = vsyncpa [#allocation4], 0
    %15 = vsyncpa [#allocation10], 0
    // Predicated region
    $region2: #{tpu_custom_call.1} parent=1 // pred_check
      _
    $region3: #{tpu_custom_call.1} parent=1 // pred_check_branch
      %17 = sbr.rel (0) target = $region5
    $region4: #{tpu_custom_call.1} parent=1 // pred_region
      %s19 = ssub.s32 256, 256
      %20 = vsyncadd [#allocation3], %s19
      %s21 = sshll.u32 [#allocation2], 4
      %s22 = int_to_ptr.vmem [resolvable:$true] %s21
      %27 = dma.hbm_to_vmem [thread:$0]  %s0, 256, %s22, [#allocation3], 128, 128, 8
    $region5: #{tpu_custom_call.1} parent=1 // pred_fallthru
      _
    // Predicated region
    $region6: #{tpu_custom_call.1} parent=1 // pred_check
      _
    $region7: #{tpu_custom_call.1} parent=1 // pred_check_branch
      %29 = sbr.rel (0) target = $region9
    $region8: #{tpu_custom_call.1} parent=1 // pred_region
      _
    $region9: #{tpu_custom_call.1} parent=1 // pred_fallthru
      _
    // Predicated region
    $region10: #{tpu_custom_call.1} parent=1 // pred_check
      _
    $region11: #{tpu_custom_call.1} parent=1 // pred_check_branch
      %31 = sbr.rel (0) target = $region13
    $region12: #{tpu_custom_call.1} parent=1 // pred_region
      %s33 = ssub.s32 512, 512
      %34 = vsyncadd [#allocation6], %s33
      %s35 = sshll.u32 [#allocation5], 4
      %s36 = int_to_ptr.vmem [resolvable:$true] %s35
      %41 = dma.hbm_to_vmem [thread:$0]  %s2, 512, %s36, [#allocation6], 128, 128, 8
    $region13: #{tpu_custom_call.1} parent=1 // pred_fallthru
      _
    // Predicated region
    $region14: #{tpu_custom_call.1} parent=1 // pred_check
      _
    $region15: #{tpu_custom_call.1} parent=1 // pred_check_branch
      %43 = sbr.rel (0) target = $region17
    $region16: #{tpu_custom_call.1} parent=1 // pred_region
      %s45 = ssub.s32 512, 512
      %46 = vsyncadd [#allocation6], %s45
      %s47 = sshll.u32 [#allocation7], 4
      %s48 = int_to_ptr.vmem [resolvable:$true] %s47
      %53 = dma.hbm_to_vmem [thread:$0]  %s3, 512, %s48, [#allocation6], 128, 128, 8
    $region17: #{tpu_custom_call.1} parent=1 // pred_fallthru
      _
    // Predicated region
    $region18: #{tpu_custom_call.1} parent=1 // pred_check
      _
    $region19: #{tpu_custom_call.1} parent=1 // pred_check_branch
      %55 = sbr.rel (0) target = $region21
    $region20: #{tpu_custom_call.1} parent=1 // pred_region
      _
    $region21: #{tpu_custom_call.1} parent=1 // pred_fallthru
      _
    // Predicated region
    $region22: #{tpu_custom_call.1} parent=1 // pred_check
      _
    $region23: #{tpu_custom_call.1} parent=1 // pred_check_branch
      %57 = sbr.rel (0) target = $region25
    $region24: #{tpu_custom_call.1} parent=1 // pred_region
      %58 = dma.done [#allocation3], 256
    $region25: #{tpu_custom_call.1} parent=1 // pred_fallthru
      _
    // Predicated region
    $region26: #{tpu_custom_call.1} parent=1 // pred_check
      _
    $region27: #{tpu_custom_call.1} parent=1 // pred_check_branch
      %60 = sbr.rel (0) target = $region29
    $region28: #{tpu_custom_call.1} parent=1 // pred_region
      %61 = dma.done [#allocation6], 512
    $region29: #{tpu_custom_call.1} parent=1 // pred_fallthru
      _
    // Predicated region
    $region30: #{tpu_custom_call.1} parent=1 // pred_check
      _
    $region31: #{tpu_custom_call.1} parent=1 // pred_check_branch
      %63 = sbr.rel (0) target = $region33
    $region32: #{tpu_custom_call.1} parent=1 // pred_region
      %64 = dma.done [#allocation6], 512
    $region33: #{tpu_custom_call.1} parent=1 // pred_fallthru
      _
    %v65 = vld [vmem:[#allocation2] sm:$0xff]
    %v66 = vld [vmem:[#allocation2 + $0x8] sm:$0xff]
    %v67 = vld [vmem:[%s1] sm:$0x3]
    %v70 = vunpack.c.l.s4 1966171168
    %v71 = vunpack.c.0.s8 %v70
    %v72 = vlaneseq
    %v73 = vshrl.u32 %v72, 7
    %v74 = vsub.s32 %v71, %v73
    %v75 = vrot.slane %v67, %v74
    %v76 = vcombine.high %v75, %v75
    %v78 = vunpack.c.l.s4 1966171168
    %v79 = vunpack.c.0.s8 %v78
    %v80 = vlaneseq
    %v81 = vshrl.u32 %v80, 7
    %v82 = vsub.s32 %v79, %v81
    %v83 = vrot.slane %v75, %v82
    %v85 = vunpack.c.l.s4 1966171168
    %v86 = vunpack.c.0.s8 %v85
    %v87 = vlaneseq
    %v88 = vshrl.u32 %v87, 7
    %v89 = vsub.s32 %v86, %v88
    %v90 = vrot.slane %v76, %v89
    %v91 = vlaneseq
    %v92 = vshrl.u32 %v91, 7
    %v93 = vsub.s32 0, %v92
    %v94 = vrot.slane %v83, %v93
    %v95 = vlaneseq
    %v96 = vshrl.u32 %v95, 7
    %v97 = vsub.s32 0, %v96
    %v98 = vrot.slane %v90, %v97
    %v101 = vmul.f32 %v65, %v94
    %v102 = vmul.f32 %v66, %v98
    %vm103 = vcmask 261120
    %v104 = vsel %vm103, %v101, 0.0
    %105 = vadd.xlane.f32.xlu0 %v104
    %v106 = vpop.xlane.xlu0 %105
    %v107 = vsel %vm103, %v102, 0.0
    %108 = vadd.xlane.f32.xlu0 %v107
    %v109 = vpop.xlane.xlu0 %108
    %v112 = vlaneseq
    %v113 = vand.u32 %v112, 127
    %v114 = vlaneseq
    %v115 = vshrl.u32 %v114, 7
    %v116 = vsub.s32 %v113, %v115
    %v117 = vrot.slane %v106, %v116
    %v118 = vlaneseq
    %v119 = vshrl.u32 %v118, 7
    %v120 = vsub.s32 %v113, %v119
    %v121 = vrot.slane %v109, %v120
    %vm122 = vcmask 1041409
    %v123 = vsel %vm122, %v121, %v117
    %vm125 = vcmask 58368
    %v126 = vsel %vm125, %v123, -inf
    %127 = vmax.xlane.f32.xlu0 %v126
    %v128 = vpop.xlane.xlu0 %127
    %v130 = vlaneseq
    %v131 = vshrl.u32 %v130, 7
    %v132 = vsub.s32 0, %v131
    %v133 = vrot.slane %v128, %v132
    %v134 = vlaneseq
    %v135 = vshrl.u32 %v134, 7
    %v136 = vsub.s32 1, %v135
    %v137 = vrot.slane %v128, %v136
    %v140 = vsub.f32 %v106, %v133
    %v141 = vsub.f32 %v109, %v137
    %v142 = vmul.f32 %v140, 1.442695
    %v143 = vpow.pop %v142
    %v144 = vmul.f32 %v141, 1.442695
    %v145 = vpow.pop %v144
    %148 = vset.pattern.permute.xlu0 0
    %149 = vperm.xlu0 %148, %v143
    %v150 = vpop.permute.xlu0 %149
    %151 = vset.pattern.permute.xlu0 0
    %152 = vperm.xlu0 %151, %v145
    %v153 = vpop.permute.xlu0 %152
    %v154 = vlaneseq
    %v155 = vshrl.u32 %v154, 7
    %v156 = vsub.s32 %v113, %v155
    %v157 = vrot.slane %v150, %v156
    %v158 = vlaneseq
    %v159 = vshrl.u32 %v158, 7
    %v160 = vsub.s32 %v113, %v159
    %v161 = vrot.slane %v153, %v160
    %v162 = vsel %vm122, %v161, %v157
    %v164 = vsel %vm125, %v162, 0.0
    %165 = vadd.xlane.f32.xlu0 %v164
    %v166 = vpop.xlane.xlu0 %165
    %v167 = vrcp.pop %v166
    %v169 = vlaneseq
    %v170 = vshrl.u32 %v169, 7
    %v171 = vsub.s32 0, %v170
    %v172 = vrot.slane %v167, %v171
    %v173 = vlaneseq
    %v174 = vshrl.u32 %v173, 7
    %v175 = vsub.s32 1, %v174
    %v176 = vrot.slane %v167, %v175
    %v179 = vmul.f32 %v143, %v172
    %v180 = vmul.f32 %v145, %v176
    %183 = vset.pattern.permute.xlu0 0
    %184 = vperm.xlu0 %183, %v179
    %v185 = vpop.permute.xlu0 %184
    %186 = vset.pattern.permute.xlu0 0
    %187 = vperm.xlu0 %186, %v180
    %v188 = vpop.permute.xlu0 %187
    %v189 = vlaneseq
    %v190 = vshrl.u32 %v189, 7
    %v191 = vsub.s32 %v113, %v190
    %v192 = vrot.slane %v185, %v191
    %v193 = vlaneseq
    %v194 = vshrl.u32 %v193, 7
    %v195 = vsub.s32 %v113, %v194
    %v196 = vrot.slane %v188, %v195
    %v197 = vsel %vm122, %v196, %v192
    %199 = vst.msk [vmem:[#allocation9] sm:$0x3] %vm125, %v197
    %v202 = vmul.f32 %v185, %v65
    %v203 = vmul.f32 %v188, %v66
    %v204 = vsel %vm103, %v202, 0.0
    %v205 = vrot.slane %v204, 4
    %v206 = vadd.f32 %v204, %v205
    %v207 = vrot.slane %v206, 2
    %v208 = vadd.f32 %v206, %v207
    %v209 = vrot.slane %v208, 1
    %v210 = vadd.f32 %v208, %v209
    %v211 = vsel %vm103, %v203, 0.0
    %v212 = vrot.slane %v211, 4
    %v213 = vadd.f32 %v211, %v212
    %v214 = vrot.slane %v213, 2
    %v215 = vadd.f32 %v213, %v214
    %v216 = vrot.slane %v215, 1
    %v217 = vadd.f32 %v215, %v216
    %v218 = vld [vmem:[#allocation5] sm:$0xff]
    %v219 = vld [vmem:[#allocation5 + $0x8] sm:$0xff]
    %v220 = vld [vmem:[#allocation5 + $0x10] sm:$0xff]
    %v221 = vld [vmem:[#allocation5 + $0x18] sm:$0xff]
    %v222 = vld [vmem:[#allocation7] sm:$0xff]
    %v223 = vld [vmem:[#allocation7 + $0x8] sm:$0xff]
    %v224 = vld [vmem:[#allocation7 + $0x10] sm:$0xff]
    %v225 = vld [vmem:[#allocation7 + $0x18] sm:$0xff]
    %v226 = vsel %vm103, %v67, 0
    %228 = vmatprep.subr.mxu0 0.0
    %229 = vmatpush1.msra.mxu0 %v222
    %230 = vmatprep.subr.mxu0 0.0
    %231 = vmatpush1.msra.mxu0 %v223
    %232 = vmatprep.subr.mxu0 0.0
    %233 = vmatpush1.msra.mxu0 %v224
    %234 = vmatprep.subr.mxu0 0.0
    %235 = vmatpush1.msra.mxu0 %v225
    %236 = vmatprep.subr.mxu0 0.0
    %237 = vmatpush1.msra.mxu0 0.0
    %238 = vmatprep.subr.mxu0 0.0
    %239 = vmatpush1.msra.mxu0 0.0
    %240 = vmatprep.subr.mxu0 0.0
    %241 = vmatpush1.msra.mxu0 0.0
    %242 = vmatprep.subr.mxu0 0.0
    %243 = vmatpush1.msra.mxu0 0.0
    %244 = vmatprep.subr.mxu0 0.0
    %245 = vmatpush1.msra.mxu0 0.0
    %246 = vmatprep.subr.mxu0 0.0
    %247 = vmatpush1.msra.mxu0 0.0
    %248 = vmatprep.subr.mxu0 0.0
    %249 = vmatpush1.msra.mxu0 0.0
    %250 = vmatprep.subr.mxu0 0.0
    %251 = vmatpush1.msra.mxu0 0.0
    %252 = vmatprep.subr.mxu0 0.0
    %253 = vmatpush1.msra.mxu0 0.0
    %254 = vmatprep.subr.mxu0 0.0
    %255 = vmatpush1.msra.mxu0 0.0
    %256 = vmatprep.subr.mxu0 0.0
    %257 = vmatpush1.msra.mxu0 0.0
    %258 = vmatprep.subr.mxu0 0.0
    %259 = vmatpush1.msra.mxu0 0.0
    %260 = vmatprep.subr.mxu0 0.0
    %261 = vmatpush1.msra.mxu0 0.0
    %262 = vmatprep.subr.mxu0 0.0
    %263 = vmatpush1.msra.mxu0 0.0
    %264 = vmatprep.subr.mxu0 0.0
    %265 = vmatpush1.msra.mxu0 0.0
    %266 = vmatprep.subr.mxu0 0.0
    %267 = vmatpush1.msra.mxu0 0.0
    %268 = vmatprep.subr.mxu0 0.0
    %269 = vmatpush1.msra.mxu0 0.0
    %270 = vmatprep.subr.mxu0 0.0
    %271 = vmatpush1.msra.mxu0 0.0
    %272 = vmatprep.subr.mxu0 0.0
    %273 = vmatpush1.msra.mxu0 0.0
    %274 = vmatprep.subr.mxu0 0.0
    %275 = vmatpush1.msra.mxu0 0.0
    %276 = vmatprep.subr.mxu0 0.0
    %277 = vmatpush1.msra.mxu0 0.0
    %278 = vmatprep.subr.mxu0 0.0
    %279 = vmatpush1.msra.mxu0 0.0
    %280 = vmatprep.subr.mxu0 0.0
    %281 = vmatpush1.msra.mxu0 0.0
    %282 = vmatprep.subr.mxu0 0.0
    %283 = vmatpush1.msra.mxu0 0.0
    %284 = vmatprep.subr.mxu0 0.0
    %285 = vmatpush1.msra.mxu0 0.0
    %286 = vmatprep.subr.mxu0 0.0
    %287 = vmatpush1.msra.mxu0 0.0
    %288 = vmatprep.subr.mxu0 0.0
    %289 = vmatpush1.msra.mxu0 0.0
    %290 = vmatprep.subr.mxu0 0.0
    %291 = vmatpush1.msra.mxu0 0.0
    %292 = vmatprep.mubr.f32.mxu0 0.0
    %293 = vmatmul.mubr.f32.gmra.mrb[0].mxu0 %v226
    %v294 = vpop.f32.mrb[0].mxu0
    %v295 = vadd.f32 0.0, %v294
    %v296 = vpop.f32.mrb[0].mxu0
    %297 = vdwg.mxu0
    %v300 = vsel %vm122, %v217, %v210
    %v301 = vsel %vm103, %v300, 0
    %303 = vmatprep.subr.mxu0 0.0
    %304 = vmatpush1.msra.mxu0 %v218
    %305 = vmatprep.subr.mxu0 0.0
    %306 = vmatpush1.msra.mxu0 %v219
    %307 = vmatprep.subr.mxu0 0.0
    %308 = vmatpush1.msra.mxu0 %v220
    %309 = vmatprep.subr.mxu0 0.0
    %310 = vmatpush1.msra.mxu0 %v221
    %311 = vmatprep.subr.mxu0 0.0
    %312 = vmatpush1.msra.mxu0 0.0
    %313 = vmatprep.subr.mxu0 0.0
    %314 = vmatpush1.msra.mxu0 0.0
    %315 = vmatprep.subr.mxu0 0.0
    %316 = vmatpush1.msra.mxu0 0.0
    %317 = vmatprep.subr.mxu0 0.0
    %318 = vmatpush1.msra.mxu0 0.0
    %319 = vmatprep.subr.mxu0 0.0
    %320 = vmatpush1.msra.mxu0 0.0
    %321 = vmatprep.subr.mxu0 0.0
    %322 = vmatpush1.msra.mxu0 0.0
    %323 = vmatprep.subr.mxu0 0.0
    %324 = vmatpush1.msra.mxu0 0.0
    %325 = vmatprep.subr.mxu0 0.0
    %326 = vmatpush1.msra.mxu0 0.0
    %327 = vmatprep.subr.mxu0 0.0
    %328 = vmatpush1.msra.mxu0 0.0
    %329 = vmatprep.subr.mxu0 0.0
    %330 = vmatpush1.msra.mxu0 0.0
    %331 = vmatprep.subr.mxu0 0.0
    %332 = vmatpush1.msra.mxu0 0.0
    %333 = vmatprep.subr.mxu0 0.0
    %334 = vmatpush1.msra.mxu0 0.0
    %335 = vmatprep.subr.mxu0 0.0
    %336 = vmatpush1.msra.mxu0 0.0
    %337 = vmatprep.subr.mxu0 0.0
    %338 = vmatpush1.msra.mxu0 0.0
    %339 = vmatprep.subr.mxu0 0.0
    %340 = vmatpush1.msra.mxu0 0.0
    %341 = vmatprep.subr.mxu0 0.0
    %342 = vmatpush1.msra.mxu0 0.0
    %343 = vmatprep.subr.mxu0 0.0
    %344 = vmatpush1.msra.mxu0 0.0
    %345 = vmatprep.subr.mxu0 0.0
    %346 = vmatpush1.msra.mxu0 0.0
    %347 = vmatprep.subr.mxu0 0.0
    %348 = vmatpush1.msra.mxu0 0.0
    %349 = vmatprep.subr.mxu0 0.0
    %350 = vmatpush1.msra.mxu0 0.0
    %351 = vmatprep.subr.mxu0 0.0
    %352 = vmatpush1.msra.mxu0 0.0
    %353 = vmatprep.subr.mxu0 0.0
    %354 = vmatpush1.msra.mxu0 0.0
    %355 = vmatprep.subr.mxu0 0.0
    %356 = vmatpush1.msra.mxu0 0.0
    %357 = vmatprep.subr.mxu0 0.0
    %358 = vmatpush1.msra.mxu0 0.0
    %359 = vmatprep.subr.mxu0 0.0
    %360 = vmatpush1.msra.mxu0 0.0
    %361 = vmatprep.subr.mxu0 0.0
    %362 = vmatpush1.msra.mxu0 0.0
    %363 = vmatprep.subr.mxu0 0.0
    %364 = vmatpush1.msra.mxu0 0.0
    %365 = vmatprep.subr.mxu0 0.0
    %366 = vmatpush1.msra.mxu0 0.0
    %367 = vmatprep.mubr.f32.mxu0 0.0
    %368 = vmatmul.mubr.f32.gmra.mrb[0].mxu0 %v301
    %v369 = vpop.f32.mrb[0].mxu0
    %v370 = vadd.f32 %v295, %v369
    %v371 = vpop.f32.mrb[0].mxu0
    %372 = vdwg.mxu0
    %v373 = vld [vmem:[%s4] sm:$0x1]
    %v375 = vlaneseq
    %v376 = vshrl.u32 %v375, 7
    %v377 = vsub.s32 0, %v376
    %v378 = vrot.slane %v373, %v377
    %v380 = vadd.f32 %v370, %v378
    %v381 = vtanh.pop %v380
    %vm382 = vcmask 254976
    %383 = vst.msk [vmem:[#allocation8] sm:$0x3] %vm382, %v381
    // Predicated region
    $region34: #{tpu_custom_call.1} parent=1 // pred_check
      _
    $region35: #{tpu_custom_call.1} parent=1 // pred_check_branch
      %385 = sbr.rel (0) target = $region37
    $region36: #{tpu_custom_call.1} parent=1 // pred_region
      %s387 = ssub.s32 32, 32
      %388 = vsyncadd [#allocation4], %s387
      %s390 = sshll.u32 [#allocation8], 4
      %s391 = int_to_ptr.vmem [resolvable:$true] %s390
      %393 = dma.vmem_to_hbm [thread:$0]  %s391, 32, %s5, [#allocation4]
    $region37: #{tpu_custom_call.1} parent=1 // pred_fallthru
      _
    // Predicated region
    $region38: #{tpu_custom_call.1} parent=1 // pred_check
      _
    $region39: #{tpu_custom_call.1} parent=1 // pred_check_branch
      %395 = sbr.rel (0) target = $region41
    $region40: #{tpu_custom_call.1} parent=1 // pred_region
      %s397 = ssub.s32 32, 32
      %398 = vsyncadd [#allocation10], %s397
      %s400 = sshll.u32 [#allocation9], 4
      %s401 = int_to_ptr.vmem [resolvable:$true] %s400
      %403 = dma.vmem_to_hbm [thread:$0]  %s401, 32, %s6, [#allocation10]
    $region41: #{tpu_custom_call.1} parent=1 // pred_fallthru
      _
    // Predicated region
    $region42: #{tpu_custom_call.1} parent=1 // pred_check
      _
    $region43: #{tpu_custom_call.1} parent=1 // pred_check_branch
      %405 = sbr.rel (0) target = $region45
    $region44: #{tpu_custom_call.1} parent=1 // pred_region
      %406 = dma.done [#allocation4], 32
    $region45: #{tpu_custom_call.1} parent=1 // pred_fallthru
      _
    // Predicated region
    $region46: #{tpu_custom_call.1} parent=1 // pred_check
      _
    $region47: #{tpu_custom_call.1} parent=1 // pred_check_branch
      %408 = sbr.rel (0) target = $region49
    $region48: #{tpu_custom_call.1} parent=1 // pred_region
      %409 = dma.done [#allocation10], 32
    $region49: #{tpu_custom_call.1} parent=1 // pred_fallthru
      _
    %410 = vsyncpa [#allocation3], 1
    %411 = vsyncpa [#allocation6], 1
    %412 = vsyncpa [#allocation4], 1
    %413 = vsyncpa [#allocation10], 1

</llo_original>
